<compile_context>
chip_gen: v5e
topology: v5e:2x2
jax: 0.10.0
libtpu: 0.0.40
codegen_flags: <defaults>
</compile_context>

<pallas_src>
import jax
import jax.numpy as jnp
from jax.experimental import pallas as pl
from jax.experimental.pallas import tpu as pltpu


def _center_kernel(x_ref, m_ref, o_ref):
    # x_ref / o_ref: (row_block, lane_block) VMEM tiles
    # m_ref:         (row_block, 1) per-row mean column (broadcasts over lanes)
    o_ref[...] = x_ref[...] - m_ref[...]


def _vmem_capacity_bytes() -> int:
    """Physical VMEM bytes for the current TPU generation (conservative fallback)."""
    try:
        info = pltpu.get_tpu_info()
        for attr in ("vmem_capacity_bytes", "vmem_bytes", "vmem_size_bytes"):
            v = getattr(info, attr, None)
            if v:
                return int(v)
    except Exception:
        pass
    return 64 * 1024 * 1024  # v7x per-TC VMEM (smallest of v5e/v6e/v7x) -> safe everywhere


def _largest_divisor(n: int, granule: int, upper: int) -> int:
    """Largest multiple of `granule` that divides n and is <= upper; 0 if none."""
    d = min(n, (upper // granule) * granule)
    while d >= granule and n % d != 0:
        d -= granule
    return d if d >= granule else 0


def _pick_blocks(R: int, L: int, itemsize: int, target_bytes: int):
    """Lane-dense block sizes dividing (R, L), respecting the TPU
    (sublane, 128)-or-full-dim BlockSpec rule, targeting ~target_bytes/block."""
    sub = max(8, (8 * 4) // itemsize)      # sublane granule: 8 f32, 16 bf16, 32 int8/fp8
    lane_ok = (L % 128 == 0)
    row_ok = (R % sub == 0)

    if not row_ok:
        # Must take all rows in one block; cap the lane block to stay near target.
        row_block = R
        if lane_ok:
            max_lane = max(128, target_bytes // max(1, R * itemsize))
            lane_block = _largest_divisor(L, 128, max_lane) or L
        else:
            # TODO(synk): pad the slab instead if R and L are both huge and unaligned.
            lane_block = L
        return row_block, lane_block

    # Lane block: prefer full rows (fully contiguous HBM DMA) whenever even a
    # minimal sub-row block fits the target; else largest 128-multiple divisor.
    if lane_ok:
        if L * sub * itemsize <= target_bytes:
            lane_block = L
        else:
            max_lane = max(128, target_bytes // (sub * itemsize))
            lane_block = _largest_divisor(L, 128, max_lane) or L
    else:
        lane_block = L  # full-extent block satisfies the constraint

    # Row block: largest sub-multiple divisor of R that keeps the block <= target.
    max_rows = max(sub, target_bytes // max(1, lane_block * itemsize))
    row_block = _largest_divisor(R, sub, max_rows) or R

    # Keep >= 2 grid steps when the slab is large (v7x: feed both TensorCores).
    if (R // row_block) * (L // lane_block) == 1 and R * L * itemsize > target_bytes:
        half_rows = _largest_divisor(R, sub, R // 2)
        if half_rows:
            row_block = half_rows
        elif lane_ok:
            half_lanes = _largest_divisor(L, 128, L // 2)
            if half_lanes:
                lane_block = half_lanes

    return row_block, lane_block


def input_center_layer(x: jax.Array, means: jax.Array) -> jax.Array:
    """x: (B, C, H, W), means: (C,) -> (B, C, H, W), computing x - means[c]."""
    B, C, H, W = x.shape
    assert means.shape == (C,)
    means = means.astype(x.dtype)

    R, L = B * C, H * W
    itemsize = x.dtype.itemsize

    x2 = x.reshape(R, L)  # lane-dense 2D slab (free reshape)
    # Per-row mean column without materializing a tiled copy.
    means_col = jnp.broadcast_to(means[None, :], (B, C)).reshape(R, 1)

    # Generation-aware sizing: block target ~ VMEM/10 so
    # (in + out) blocks x 2 pipeline buffers ~= 40% of VMEM.
    cap = _vmem_capacity_bytes()
    target_bytes = max(2 * 1024 * 1024, min(16 * 1024 * 1024, cap // 10))
    vmem_limit = max(32 * 1024 * 1024, min(cap * 3 // 4, 96 * 1024 * 1024))

    row_block, lane_block = _pick_blocks(R, L, itemsize, target_bytes)
    grid = (R // row_block, L // lane_block)  # row axis outer, lane axis innermost

    cost = pl.CostEstimate(
        flops=R * L,
        transcendentals=0,
        bytes_accessed=2 * R * L * itemsize + R * itemsize,
    )

    out2 = pl.pallas_call(
        _center_kernel,
        out_shape=jax.ShapeDtypeStruct((R, L), x.dtype),
        grid=grid,
        in_specs=[
            pl.BlockSpec((row_block, lane_block), lambda i, j: (i, j)),
            pl.BlockSpec((row_block, 1), lambda i, j: (i, 0)),  # constant across inner axis
        ],
        out_specs=pl.BlockSpec((row_block, lane_block), lambda i, j: (i, j)),
        compiler_params=pltpu.CompilerParams(
            dimension_semantics=("parallel", "parallel"),
            vmem_limit_bytes=int(vmem_limit),
        ),
        cost_estimate=cost,
    )(x2, means_col)

    return out2.reshape(B, C, H, W)


if __name__ == "__main__":
    key = jax.random.PRNGKey(0)

    # --- primary check: small NCHW batch, channel means like ImageNet ---
    B, C, H, W = 2, 4, 16, 16
    means = jnp.array([0.485, 0.456, 0.406, 0.5], dtype=jnp.float32)
    x = jax.random.uniform(key, (B, C, H, W), dtype=jnp.float32)

    out = input_center_layer(x, means)
    out = jax.block_until_ready(out)

    ref = x - means.reshape(1, C, 1, 1)
    assert out.shape == (B, C, H, W)
    assert out.dtype == jnp.float32
    assert jnp.allclose(out, ref, atol=1e-6), "mismatch vs reference"

    # --- robustness check: C=3 (R not a multiple of the sublane granule) ---
    B2, C2, H2, W2 = 2, 3, 16, 16
    means3 = jnp.array([0.485, 0.456, 0.406], dtype=jnp.float32)
    x3 = jax.random.uniform(jax.random.PRNGKey(1), (B2, C2, H2, W2), dtype=jnp.float32)
    out3 = jax.block_until_ready(input_center_layer(x3, means3))
    ref3 = x3 - means3.reshape(1, C2, 1, 1)
    assert jnp.allclose(out3, ref3, atol=1e-6), "mismatch vs reference (C=3 path)"

    print("KERNEL_OK")
</pallas_src>

<mosaic_0001>
module attributes {stable_mosaic.version = 11 : i64} {
  func.func @_center_kernel(%arg0: i32, %arg1: i32, %arg2: memref<8x256xf32, #tpu.memory_space<vmem>>, %arg3: memref<8x1xf32, #tpu.memory_space<vmem>>, %arg4: memref<8x256xf32, #tpu.memory_space<vmem>>) attributes {dimension_semantics = [#tpu.dimension_semantics<parallel>, #tpu.dimension_semantics<parallel>], iteration_bounds = array<i64: 1, 1>, scalar_prefetch = 0 : i64, scratch_operands = 0 : i64, tpu.core_type = #tpu.core_type<tc>, window_params = [{transform_indices = @transform_0, window_bounds = array<i64: 8, 256>}, {transform_indices = @transform_1, window_bounds = array<i64: 8, 1>}, {transform_indices = @transform_2, window_bounds = array<i64: 8, 256>}]} {
    %c0 = arith.constant 0 : index
    %c0_0 = arith.constant 0 : index
    %0 = vector.load %arg2[%c0, %c0_0] : memref<8x256xf32, #tpu.memory_space<vmem>>, vector<8x256xf32>
    %c0_1 = arith.constant 0 : index
    %c0_2 = arith.constant 0 : index
    %1 = vector.load %arg3[%c0_1, %c0_2] : memref<8x1xf32, #tpu.memory_space<vmem>>, vector<8x1xf32>
    %2 = vector.broadcast %1 : vector<8x1xf32> to vector<8x256xf32>
    %3 = arith.subf %0, %2 : vector<8x256xf32>
    %c0_3 = arith.constant 0 : index
    %c0_4 = arith.constant 0 : index
    %4 = vector.load %arg4[%c0_3, %c0_4] : memref<8x256xf32, #tpu.memory_space<vmem>>, vector<8x256xf32>
    tpu.vector_store %arg4[%c0_3, %c0_4], %3 {strides = array<i32>} : memref<8x256xf32, #tpu.memory_space<vmem>>, vector<8x256xf32>,
    return
  }
  func.func @transform_0(%arg0: i32, %arg1: i32) -> (i32, i32) {
    %c0_i32 = arith.constant 0 : i32
    return %arg0, %arg1 : i32, i32
  }
  func.func @transform_1(%arg0: i32, %arg1: i32) -> (i32, i32) {
    %c0_i32 = arith.constant 0 : i32
    %c0_i32_0 = arith.constant 0 : i32
    return %arg0, %c0_i32 : i32, i32
  }
  func.func @transform_2(%arg0: i32, %arg1: i32) -> (i32, i32) {
    %c0_i32 = arith.constant 0 : i32
    return %arg0, %arg1 : i32, i32
  }
}

</mosaic_0001>

<llo_original>
// kernel: tpu_custom_call.1
$region0: #{tpu_custom_call.1}
  #allocation0 [shape = 'u32[]', space=smem, size = 0x4, offset = 0x4, fixed_abs, tag = 'smem constant byte address 0x4 - core index']
  #allocation1 [shape = 'u32[72,128]{1,0:T(1,128)}', space=vmem, size = 0x9000, scoped, tag = 'internal scratch']
  %s0 = inlined_call_operand.hbm [shape: f32[8,256], index: 0, kind: input, shape index: {}]
  %s1 = inlined_call_operand.vmem [shape: f32[8,1], index: 1, kind: input, shape index: {}]
  %s2 = inlined_call_operand.hbm [shape: f32[8,256], index: 2, kind: output, shape index: {}]
  %s3 = sld [smem:[#allocation0]]
  $region22: #{tpu_custom_call.1} parent=0
    _
  %s5 = ssub.s32 1, %s3
  %s6 = scalar_select 0, %s5, %s3
  $region1: #{tpu_custom_call.1} parent=0
    #allocation2 [shape = 'u8[8192]{0}', space=vmem, size = 0x2000, scoped, tag = 'input window, operand 0, single buffered']
    #allocation3 [shape = 's32[1]{0}', space=sflag, size = 0x4, scoped, tag = 'scoped memory for tpu_custom_call.1']
    #allocation4 [shape = 's32[1]{0}', space=sflag, size = 0x4, scoped, tag = 'scoped memory for tpu_custom_call.1']
    #allocation5 [shape = 'u8[8192]{0}', space=vmem, size = 0x2000, scoped, tag = 'output window, operand 0, single buffered']
    %7 = vsyncpa [#allocation3], 0
    %8 = vsyncpa [#allocation4], 0
    // Predicated region
    $region2: #{tpu_custom_call.1} parent=1 // pred_check
      _
    $region3: #{tpu_custom_call.1} parent=1 // pred_check_branch
      %10 = sbr.rel (0) target = $region5
    $region4: #{tpu_custom_call.1} parent=1 // pred_region
      %12 = vsyncadd [#allocation3], 0
      %s14 = sshll.u32 %s0, 4
      %s15 = int_to_ptr.hbm [resolvable:$true] %s14
      %s16 = sshll.u32 [#allocation2], 4
      %s17 = int_to_ptr.vmem [resolvable:$true] %s16
      %19 = dma.hbm_to_vmem [thread:$0]  %s15, 256, %s17, [#allocation3]
    $region5: #{tpu_custom_call.1} parent=1 // pred_fallthru
      _
    // Predicated region
    $region6: #{tpu_custom_call.1} parent=1 // pred_check
      _
    $region7: #{tpu_custom_call.1} parent=1 // pred_check_branch
      %21 = sbr.rel (0) target = $region9
    $region8: #{tpu_custom_call.1} parent=1 // pred_region
      _
    $region9: #{tpu_custom_call.1} parent=1 // pred_fallthru
      _
    // Predicated region
    $region10: #{tpu_custom_call.1} parent=1 // pred_check
      _
    $region11: #{tpu_custom_call.1} parent=1 // pred_check_branch
      %23 = sbr.rel (0) target = $region13
    $region12: #{tpu_custom_call.1} parent=1 // pred_region
      %25 = dma.done [#allocation3], 256
    $region13: #{tpu_custom_call.1} parent=1 // pred_fallthru
      _
    %v26 = vld [vmem:[#allocation2] sm:$0xff]
    %v27 = vld [vmem:[#allocation2 + $0x8] sm:$0xff]
    %v28 = vld [vmem:[%s1] sm:$0xff]
    %30 = vset.pattern.permute.xlu0 0
    %31 = vperm.xlu0 %30, %v28
    %v32 = vpop.permute.xlu0 %31
    %v34 = vsub.f32 %v26, %v32
    %v35 = vsub.f32 %v27, %v32
    %36 = vst [vmem:[#allocation5] sm:$0xff] %v34
    %37 = vst [vmem:[#allocation5 + $0x8] sm:$0xff] %v35
    // Predicated region
    $region14: #{tpu_custom_call.1} parent=1 // pred_check
      _
    $region15: #{tpu_custom_call.1} parent=1 // pred_check_branch
      %39 = sbr.rel (0) target = $region17
    $region16: #{tpu_custom_call.1} parent=1 // pred_region
      %41 = vsyncadd [#allocation4], 0
      %s43 = sshll.u32 [#allocation5], 4
      %s44 = int_to_ptr.vmem [resolvable:$true] %s43
      %s45 = sshll.u32 %s2, 4
      %s46 = int_to_ptr.hbm [resolvable:$true] %s45
      %48 = dma.vmem_to_hbm [thread:$0]  %s44, 256, %s46, [#allocation4]
    $region17: #{tpu_custom_call.1} parent=1 // pred_fallthru
      _
    // Predicated region
    $region18: #{tpu_custom_call.1} parent=1 // pred_check
      _
    $region19: #{tpu_custom_call.1} parent=1 // pred_check_branch
      %50 = sbr.rel (0) target = $region21
    $region20: #{tpu_custom_call.1} parent=1 // pred_region
      %52 = dma.done [#allocation4], 256
    $region21: #{tpu_custom_call.1} parent=1 // pred_fallthru
      _
    %53 = vsyncpa [#allocation3], 1
    %54 = vsyncpa [#allocation4], 1

</llo_original>
